<compile_context>
chip_gen: v6e
topology: v6e:2x2x1
jax: 0.10.0
libtpu: 0.0.40
codegen_flags: <defaults>
</compile_context>

<pallas_src>
import functools
import math

import jax
import jax.numpy as jnp
from jax import lax
from jax.experimental import pallas as pl
from jax.experimental.pallas import tpu as pltpu


# ---------------------------------------------------------------------------
# Kernel A: fused QKV projection -> head-major (B, H, S, hd) Q, K, V.
# ---------------------------------------------------------------------------
def _qkv_proj_kernel(x_ref, w_ref, b_ref, q_ref, k_ref, v_ref, *, num_heads,
                     head_dim):
    x = x_ref[0]                                               # (bs, D)
    # Single MXU pass over the fused, VMEM-resident (D, 3D) weight.
    y = jnp.dot(x, w_ref[...], preferred_element_type=jnp.float32)
    y = y + b_ref[...]                                         # (bs, 3D)
    d = num_heads * head_dim
    for h in range(num_heads):                                 # static unroll
        lo = h * head_dim
        hi = lo + head_dim
        q_ref[0, h] = y[:, lo:hi].astype(q_ref.dtype)          # Q pre-scaled
        k_ref[0, h] = y[:, d + lo:d + hi].astype(k_ref.dtype)
        v_ref[0, h] = y[:, 2 * d + lo:2 * d + hi].astype(v_ref.dtype)


# ---------------------------------------------------------------------------
# Kernel B: flash attention (online softmax over kv blocks) fused with the
# dense output projection (reduction over heads).
# Grid: (B, q_blocks, H, kv_blocks) -> ("parallel","parallel","arbitrary","arbitrary")
# ---------------------------------------------------------------------------
def _flash_attn_out_kernel(q_ref, k_ref, v_ref, wo_ref, bo_ref, o_ref,
                           m_scr, l_scr, acc_scr, out_scr, *, block_q, block_k):
    qi = pl.program_id(1)
    h = pl.program_id(2)
    ki = pl.program_id(3)
    nh = pl.num_programs(2)
    nk = pl.num_programs(3)

    # ---- per-(head, q-block) init ----------------------------------------
    @pl.when(ki == 0)
    def _init():
        m_scr[...] = jnp.full_like(m_scr, -jnp.inf)
        l_scr[...] = jnp.zeros_like(l_scr)
        acc_scr[...] = jnp.zeros_like(acc_scr)

    q_first = qi * block_q
    q_last = q_first + (block_q - 1)
    k_first = ki * block_k
    k_last = k_first + (block_k - 1)

    def process(masked):
        q = q_ref[0, 0]                                        # (bq, hd)
        k = k_ref[0, 0]                                        # (bk, hd)
        v = v_ref[0, 0]                                        # (bk, hd)
        # scores: contract last dims of both operands (no k.T / XLU transpose)
        s = lax.dot_general(q, k, (((1,), (1,)), ((), ())),
                            preferred_element_type=jnp.float32)  # (bq, bk)
        if masked:
            # Diagonal-straddling block only: broadcast-compare causal mask
            # from a (bq,1) row iota and a (1,bk) col iota; module's -10000.0
            # fill value is kept to match PyTorch exactly.
            rows = q_first + lax.broadcasted_iota(jnp.int32, (block_q, 1), 0)
            cols = k_first + lax.broadcasted_iota(jnp.int32, (1, block_k), 1)
            s = jnp.where(cols <= rows, s, jnp.float32(-10000.0))
        # online softmax update (f32)
        m_prev = m_scr[...]
        m_new = jnp.maximum(m_prev, jnp.max(s, axis=-1, keepdims=True))
        alpha = jnp.exp(m_prev - m_new)
        p = jnp.exp(s - m_new)
        l_scr[...] = alpha * l_scr[...] + jnp.sum(p, axis=-1, keepdims=True)
        acc_scr[...] = alpha * acc_scr[...] + jnp.dot(
            p.astype(v.dtype), v, preferred_element_type=jnp.float32)
        m_scr[...] = m_new

    # Fully below the diagonal: no masking work at all.
    @pl.when(k_last <= q_first)
    def _interior():
        process(masked=False)

    # Straddles the diagonal: apply the causal mask.
    @pl.when(jnp.logical_and(k_last > q_first, k_first <= q_last))
    def _diagonal():
        process(masked=True)

    # Blocks with k_first > q_last are fully masked: no compute, and their K/V
    # DMAs are suppressed by the clamped index_map in the wrapper.

    # ---- finalize this head and fold into the dense projection ------------
    @pl.when(ki == nk - 1)
    def _finalize():
        inv_l = pl.reciprocal(l_scr[...], approx=True)          # EUP slot
        ctx = acc_scr[...] * inv_l                              # (bq, hd) f32
        wo_h = wo_ref[h]                                        # (hd, D) resident
        contrib = jnp.dot(ctx.astype(wo_h.dtype), wo_h,
                          preferred_element_type=jnp.float32)   # (bq, D)

        @pl.when(h == 0)
        def _():
            out_scr[...] = contrib + bo_ref[...]

        @pl.when(h > 0)
        def _():
            out_scr[...] = out_scr[...] + contrib

        @pl.when(h == nh - 1)
        def _():
            o_ref[0] = out_scr[...].astype(o_ref.dtype)


# ---------------------------------------------------------------------------
# Host wrapper
# ---------------------------------------------------------------------------
def _pick_block(s, target):
    """Largest block <= target that divides s (halving search; fallback: s)."""
    if s <= target:
        return s
    b = target
    while b >= 8 and s % b != 0:
        b //= 2
    return b if (b >= 8 and s % b == 0) else s


def _vmem_limit(est_bytes):
    # 2x headroom; floor 16 MiB, cap 56 MiB so the same config stays within
    # v7x's 64 MiB/TensorCore VMEM (v5e/v6e have 128 MiB).
    return int(min(max(2 * est_bytes, 16 * 1024 * 1024), 56 * 1024 * 1024))


def gpt_self_attention(x, wqkv, bqkv, wo, bo, *, num_heads,
                       block_s=None, block_q=None, block_k=None,
                       qkv_dtype=None):
    """Forward pass of GPTSelfAttention (eval mode, attention_mask=None).

    Weights are stored transposed vs. PyTorch: wqkv (D, 3D), wo (D, D),
    biases (1, 3D) / (1, D), so y = x @ W + b.
    """
    B, S, D = x.shape
    H = num_heads
    hd = D // H
    assert H * hd == D, "dim must be divisible by num_heads"
    if qkv_dtype is None:
        qkv_dtype = x.dtype                 # pass jnp.bfloat16 on v5e/v6e/v7x

    if block_s is None:
        block_s = _pick_block(S, 256)
    if block_q is None:
        block_q = _pick_block(S, 256)
    if block_k is None:
        block_k = _pick_block(S, 512)
    for blk in (block_s, block_q, block_k):
        assert S % blk == 0 and (blk == S or blk % 8 == 0), \
            "sequence blocks must divide S and be multiples of 8"

    # ---- host-side (one-time) weight repacking ----------------------------
    # PyTorch qkv output per head h: [q_h | k_h | v_h]. Repack head-major into
    # one fused (D, 3D) weight ordered [Q_allheads | K_allheads | V_allheads]
    # with the 1/sqrt(hd) scale folded into the Q columns and Q bias.
    scale = 1.0 / math.sqrt(hd)
    wqkv_r = wqkv.reshape(D, H, 3, hd)
    w_fused = jnp.concatenate(
        [(wqkv_r[:, :, 0, :] * scale).reshape(D, D),
         wqkv_r[:, :, 1, :].reshape(D, D),
         wqkv_r[:, :, 2, :].reshape(D, D)], axis=1)            # (D, 3D)
    b_r = bqkv.reshape(H, 3, hd)
    b_fused = jnp.concatenate(
        [(b_r[:, 0, :] * scale).reshape(1, D),
         b_r[:, 1, :].reshape(1, D),
         b_r[:, 2, :].reshape(1, D)], axis=1)                  # (1, 3D)
    wo3 = wo.reshape(H, hd, D)              # rows of wo are head-contiguous
    bo2 = bo.reshape(1, D)

    item_x = jnp.dtype(x.dtype).itemsize
    item_w = jnp.dtype(wqkv.dtype).itemsize
    item_qkv = jnp.dtype(qkv_dtype).itemsize

    # ---- Kernel A: fused QKV projection ------------------------------------
    est_a = (2 * block_s * D * item_x                 # x blocks (dbl-buffered)
             + (3 * D * D + 3 * D) * item_w           # resident fused W + b
             + 2 * 3 * block_s * D * item_qkv)        # q/k/v output blocks
    qkv_shape = jax.ShapeDtypeStruct((B, H, S, hd), qkv_dtype)
    q, k, v = pl.pallas_call(
        functools.partial(_qkv_proj_kernel, num_heads=H, head_dim=hd),
        out_shape=[qkv_shape, qkv_shape, qkv_shape],
        grid=(B, S // block_s),
        in_specs=[
            pl.BlockSpec((1, block_s, D), lambda b, si: (b, si, 0)),
            pl.BlockSpec((D, 3 * D), lambda b, si: (0, 0)),     # resident
            pl.BlockSpec((1, 3 * D), lambda b, si: (0, 0)),     # resident
        ],
        out_specs=[pl.BlockSpec((1, H, block_s, hd),
                                lambda b, si: (b, 0, si, 0))] * 3,
        compiler_params=pltpu.CompilerParams(
            dimension_semantics=("parallel", "parallel"),
            vmem_limit_bytes=_vmem_limit(est_a)),
    )(x, w_fused, b_fused)

    # ---- Kernel B: flash attention + dense output projection ---------------
    nq, nk = S // block_q, S // block_k

    def q_map(b, qi, h, ki):
        return (b, h, qi, 0)

    def kv_map(b, qi, h, ki):
        # Clamp to the last causally-needed kv block so fully-masked blocks
        # map to an already-resident block (DMA suppressed).
        last_needed = (qi * block_q + block_q - 1) // block_k
        return (b, h, jnp.minimum(ki, last_needed), 0)

    est_b = (2 * block_q * hd * item_qkv              # q (dbl-buffered)
             + 2 * 2 * block_k * hd * item_qkv        # k, v (dbl-buffered)
             + (D * D + D) * item_w                   # resident wo + bo
             + 2 * block_q * D * item_x               # output blocks
             + 4 * block_q * (2 + hd + D))            # f32 scratch

    out = pl.pallas_call(
        functools.partial(_flash_attn_out_kernel,
                          block_q=block_q, block_k=block_k),
        out_shape=jax.ShapeDtypeStruct((B, S, D), x.dtype),
        grid=(B, nq, H, nk),
        in_specs=[
            pl.BlockSpec((1, 1, block_q, hd), q_map),
            pl.BlockSpec((1, 1, block_k, hd), kv_map),
            pl.BlockSpec((1, 1, block_k, hd), kv_map),
            pl.BlockSpec((H, hd, D), lambda b, qi, h, ki: (0, 0, 0)),  # resident
            pl.BlockSpec((1, D), lambda b, qi, h, ki: (0, 0)),         # resident
        ],
        out_specs=pl.BlockSpec((1, block_q, D), lambda b, qi, h, ki: (b, qi, 0)),
        scratch_shapes=[
            pltpu.VMEM((block_q, 1), jnp.float32),    # running max m
            pltpu.VMEM((block_q, 1), jnp.float32),    # running sum l
            pltpu.VMEM((block_q, hd), jnp.float32),   # per-head context acc
            pltpu.VMEM((block_q, D), jnp.float32),    # output-projection acc
        ],
        compiler_params=pltpu.CompilerParams(
            dimension_semantics=("parallel", "parallel", "arbitrary", "arbitrary"),
            vmem_limit_bytes=_vmem_limit(est_b)),
    )(q, k, v, wo3, bo2)
    return out


def reference(x, wqkv, bqkv, wo, bo, *, num_heads):
    """Pure-JAX mirror of the PyTorch forward (eval mode, no attention_mask)."""
    B, S, D = x.shape
    hd = D // num_heads
    qkv = x @ wqkv + bqkv.reshape(1, 1, 3 * D)
    qkv = qkv.reshape(B, S, num_heads, 3 * hd).transpose(0, 2, 1, 3)
    q, k, v = jnp.split(qkv, 3, axis=-1)                        # (B, H, S, hd)
    s = jnp.einsum("bhqd,bhkd->bhqk", q, k) / math.sqrt(hd)
    causal = jnp.tril(jnp.ones((S, S), dtype=bool))[None, None]
    s = jnp.where(causal, s, jnp.float32(-10000.0))
    p = jax.nn.softmax(s, axis=-1)
    ctx = jnp.einsum("bhqk,bhkd->bhqd", p, v)
    ctx = ctx.transpose(0, 2, 1, 3).reshape(B, S, D)
    return ctx @ wo + bo.reshape(1, 1, D)


if __name__ == "__main__":
    # Small shapes, but big enough to exercise multi-block flash tiling:
    # interior (unmasked), diagonal (masked) and skipped kv blocks all occur.
    B, S, D, H = 2, 64, 64, 4

    key = jax.random.PRNGKey(0)
    kx, k1, k2, k3, k4 = jax.random.split(key, 5)
    x = jax.random.normal(kx, (B, S, D), dtype=jnp.float32)

    # nn.Linear(dim, 3*dim) / nn.Linear(dim, dim) parameters (stored (in, out)).
    wqkv = jax.random.normal(k1, (D, 3 * D), dtype=jnp.float32) * 0.02
    bqkv = jax.random.normal(k2, (1, 3 * D), dtype=jnp.float32) * 0.02
    wo = jax.random.normal(k3, (D, D), dtype=jnp.float32) * 0.02
    bo = jax.random.normal(k4, (1, D), dtype=jnp.float32) * 0.02

    out = gpt_self_attention(x, wqkv, bqkv, wo, bo, num_heads=H,
                             block_s=32, block_q=32, block_k=32)
    out = jax.block_until_ready(out)

    ref = reference(x, wqkv, bqkv, wo, bo, num_heads=H)
    assert out.shape == (B, S, D)
    assert jnp.allclose(out, ref, atol=2e-3, rtol=2e-3), "mismatch vs JAX reference"

    print("KERNEL_OK")
</pallas_src>

<mosaic_0001>
module attributes {stable_mosaic.version = 11 : i64} {
  func.func @_qkv_proj_kernel(%arg0: i32, %arg1: i32, %arg2: memref<1x32x64xf32, #tpu.memory_space<vmem>>, %arg3: memref<64x192xf32, #tpu.memory_space<vmem>>, %arg4: memref<1x192xf32, #tpu.memory_space<vmem>>, %arg5: memref<1x4x32x16xf32, #tpu.memory_space<vmem>>, %arg6: memref<1x4x32x16xf32, #tpu.memory_space<vmem>>, %arg7: memref<1x4x32x16xf32, #tpu.memory_space<vmem>>) attributes {dimension_semantics = [#tpu.dimension_semantics<parallel>, #tpu.dimension_semantics<parallel>], iteration_bounds = array<i64: 2, 2>, scalar_prefetch = 0 : i64, scratch_operands = 0 : i64, tpu.core_type = #tpu.core_type<tc>, window_params = [{transform_indices = @transform_0, window_bounds = array<i64: 1, 32, 64>}, {pipeline_mode = #tpu.pipeline_mode<synchronous>, transform_indices = @transform_1, window_bounds = array<i64: 64, 192>}, {pipeline_mode = #tpu.pipeline_mode<synchronous>, transform_indices = @transform_2, window_bounds = array<i64: 1, 192>}, {transform_indices = @transform_3, window_bounds = array<i64: 1, 4, 32, 16>}, {transform_indices = @transform_4, window_bounds = array<i64: 1, 4, 32, 16>}, {transform_indices = @transform_5, window_bounds = array<i64: 1, 4, 32, 16>}]} {
    %c0 = arith.constant 0 : index
    %c0_0 = arith.constant 0 : index
    %c0_1 = arith.constant 0 : index
    %0 = vector.load %arg2[%c0, %c0_0, %c0_1] : memref<1x32x64xf32, #tpu.memory_space<vmem>>, vector<1x32x64xf32>
    %1 = vector.shape_cast %0 : vector<1x32x64xf32> to vector<32x64xf32>
    %c0_2 = arith.constant 0 : index
    %c0_3 = arith.constant 0 : index
    %2 = vector.load %arg3[%c0_2, %c0_3] : memref<64x192xf32, #tpu.memory_space<vmem>>, vector<64x192xf32>
    %cst = arith.constant dense<0.000000e+00> : vector<32x192xf32>
    %3 = tpu.matmul %1, %2, %cst {dimension_numbers = #tpu.dot_dimension_numbers<[1], [0], [0], [1], [0, 0, 1, 1], [], []>} : vector<32x64xf32>, vector<64x192xf32>, vector<32x192xf32> -> vector<32x192xf32>
    %c0_4 = arith.constant 0 : index
    %c0_5 = arith.constant 0 : index
    %4 = vector.load %arg4[%c0_4, %c0_5] : memref<1x192xf32, #tpu.memory_space<vmem>>, vector<1x192xf32>
    %5 = vector.broadcast %4 : vector<1x192xf32> to vector<32x192xf32>
    %6 = arith.addf %3, %5 : vector<32x192xf32>
    %7 = vector.extract_strided_slice %6 {offsets = [0, 0], sizes = [32, 16], strides = [1, 1]} : vector<32x192xf32> to vector<32x16xf32>
    %c0_6 = arith.constant 0 : index
    %c0_7 = arith.constant 0 : index
    %c0_8 = arith.constant 0 : index
    %c0_9 = arith.constant 0 : index
    %8 = vector.load %arg5[%c0_6, %c0_7, %c0_8, %c0_9] : memref<1x4x32x16xf32, #tpu.memory_space<vmem>>, vector<1x1x32x16xf32>
    %9 = vector.shape_cast %8 : vector<1x1x32x16xf32> to vector<32x16xf32>
    %10 = vector.shape_cast %7 : vector<32x16xf32> to vector<1x1x32x16xf32>
    tpu.vector_store %arg5[%c0_6, %c0_7, %c0_8, %c0_9], %10 {strides = array<i32>} : memref<1x4x32x16xf32, #tpu.memory_space<vmem>>, vector<1x1x32x16xf32>,
    %11 = vector.extract_strided_slice %6 {offsets = [0, 64], sizes = [32, 16], strides = [1, 1]} : vector<32x192xf32> to vector<32x16xf32>
    %c0_10 = arith.constant 0 : index
    %c0_11 = arith.constant 0 : index
    %c0_12 = arith.constant 0 : index
    %c0_13 = arith.constant 0 : index
    %12 = vector.load %arg6[%c0_10, %c0_11, %c0_12, %c0_13] : memref<1x4x32x16xf32, #tpu.memory_space<vmem>>, vector<1x1x32x16xf32>
    %13 = vector.shape_cast %12 : vector<1x1x32x16xf32> to vector<32x16xf32>
    %14 = vector.shape_cast %11 : vector<32x16xf32> to vector<1x1x32x16xf32>
    tpu.vector_store %arg6[%c0_10, %c0_11, %c0_12, %c0_13], %14 {strides = array<i32>} : memref<1x4x32x16xf32, #tpu.memory_space<vmem>>, vector<1x1x32x16xf32>,
    %15 = vector.extract_strided_slice %6 {offsets = [0, 128], sizes = [32, 16], strides = [1, 1]} : vector<32x192xf32> to vector<32x16xf32>
    %c0_14 = arith.constant 0 : index
    %c0_15 = arith.constant 0 : index
    %c0_16 = arith.constant 0 : index
    %c0_17 = arith.constant 0 : index
    %16 = vector.load %arg7[%c0_14, %c0_15, %c0_16, %c0_17] : memref<1x4x32x16xf32, #tpu.memory_space<vmem>>, vector<1x1x32x16xf32>
    %17 = vector.shape_cast %16 : vector<1x1x32x16xf32> to vector<32x16xf32>
    %18 = vector.shape_cast %15 : vector<32x16xf32> to vector<1x1x32x16xf32>
    tpu.vector_store %arg7[%c0_14, %c0_15, %c0_16, %c0_17], %18 {strides = array<i32>} : memref<1x4x32x16xf32, #tpu.memory_space<vmem>>, vector<1x1x32x16xf32>,
    %19 = vector.extract_strided_slice %6 {offsets = [0, 16], sizes = [32, 16], strides = [1, 1]} : vector<32x192xf32> to vector<32x16xf32>
    %c0_18 = arith.constant 0 : index
    %c1 = arith.constant 1 : index
    %c0_19 = arith.constant 0 : index
    %c0_20 = arith.constant 0 : index
    %20 = vector.load %arg5[%c0_18, %c1, %c0_19, %c0_20] : memref<1x4x32x16xf32, #tpu.memory_space<vmem>>, vector<1x1x32x16xf32>
    %21 = vector.shape_cast %20 : vector<1x1x32x16xf32> to vector<32x16xf32>
    %22 = vector.shape_cast %19 : vector<32x16xf32> to vector<1x1x32x16xf32>
    tpu.vector_store %arg5[%c0_18, %c1, %c0_19, %c0_20], %22 {strides = array<i32>} : memref<1x4x32x16xf32, #tpu.memory_space<vmem>>, vector<1x1x32x16xf32>,
    %23 = vector.extract_strided_slice %6 {offsets = [0, 80], sizes = [32, 16], strides = [1, 1]} : vector<32x192xf32> to vector<32x16xf32>
    %c0_21 = arith.constant 0 : index
    %c1_22 = arith.constant 1 : index
    %c0_23 = arith.constant 0 : index
    %c0_24 = arith.constant 0 : index
    %24 = vector.load %arg6[%c0_21, %c1_22, %c0_23, %c0_24] : memref<1x4x32x16xf32, #tpu.memory_space<vmem>>, vector<1x1x32x16xf32>
    %25 = vector.shape_cast %24 : vector<1x1x32x16xf32> to vector<32x16xf32>
    %26 = vector.shape_cast %23 : vector<32x16xf32> to vector<1x1x32x16xf32>
    tpu.vector_store %arg6[%c0_21, %c1_22, %c0_23, %c0_24], %26 {strides = array<i32>} : memref<1x4x32x16xf32, #tpu.memory_space<vmem>>, vector<1x1x32x16xf32>,
    %27 = vector.extract_strided_slice %6 {offsets = [0, 144], sizes = [32, 16], strides = [1, 1]} : vector<32x192xf32> to vector<32x16xf32>
    %c0_25 = arith.constant 0 : index
    %c1_26 = arith.constant 1 : index
    %c0_27 = arith.constant 0 : index
    %c0_28 = arith.constant 0 : index
    %28 = vector.load %arg7[%c0_25, %c1_26, %c0_27, %c0_28] : memref<1x4x32x16xf32, #tpu.memory_space<vmem>>, vector<1x1x32x16xf32>
    %29 = vector.shape_cast %28 : vector<1x1x32x16xf32> to vector<32x16xf32>
    %30 = vector.shape_cast %27 : vector<32x16xf32> to vector<1x1x32x16xf32>
    tpu.vector_store %arg7[%c0_25, %c1_26, %c0_27, %c0_28], %30 {strides = array<i32>} : memref<1x4x32x16xf32, #tpu.memory_space<vmem>>, vector<1x1x32x16xf32>,
    %31 = vector.extract_strided_slice %6 {offsets = [0, 32], sizes = [32, 16], strides = [1, 1]} : vector<32x192xf32> to vector<32x16xf32>
    %c0_29 = arith.constant 0 : index
    %c2 = arith.constant 2 : index
    %c0_30 = arith.constant 0 : index
    %c0_31 = arith.constant 0 : index
    %32 = vector.load %arg5[%c0_29, %c2, %c0_30, %c0_31] : memref<1x4x32x16xf32, #tpu.memory_space<vmem>>, vector<1x1x32x16xf32>
    %33 = vector.shape_cast %32 : vector<1x1x32x16xf32> to vector<32x16xf32>
    %34 = vector.shape_cast %31 : vector<32x16xf32> to vector<1x1x32x16xf32>
    tpu.vector_store %arg5[%c0_29, %c2, %c0_30, %c0_31], %34 {strides = array<i32>} : memref<1x4x32x16xf32, #tpu.memory_space<vmem>>, vector<1x1x32x16xf32>,
    %35 = vector.extract_strided_slice %6 {offsets = [0, 96], sizes = [32, 16], strides = [1, 1]} : vector<32x192xf32> to vector<32x16xf32>
    %c0_32 = arith.constant 0 : index
    %c2_33 = arith.constant 2 : index
    %c0_34 = arith.constant 0 : index
    %c0_35 = arith.constant 0 : index
    %36 = vector.load %arg6[%c0_32, %c2_33, %c0_34, %c0_35] : memref<1x4x32x16xf32, #tpu.memory_space<vmem>>, vector<1x1x32x16xf32>
    %37 = vector.shape_cast %36 : vector<1x1x32x16xf32> to vector<32x16xf32>
    %38 = vector.shape_cast %35 : vector<32x16xf32> to vector<1x1x32x16xf32>
    tpu.vector_store %arg6[%c0_32, %c2_33, %c0_34, %c0_35], %38 {strides = array<i32>} : memref<1x4x32x16xf32, #tpu.memory_space<vmem>>, vector<1x1x32x16xf32>,
    %39 = vector.extract_strided_slice %6 {offsets = [0, 160], sizes = [32, 16], strides = [1, 1]} : vector<32x192xf32> to vector<32x16xf32>
    %c0_36 = arith.constant 0 : index
    %c2_37 = arith.constant 2 : index
    %c0_38 = arith.constant 0 : index
    %c0_39 = arith.constant 0 : index
    %40 = vector.load %arg7[%c0_36, %c2_37, %c0_38, %c0_39] : memref<1x4x32x16xf32, #tpu.memory_space<vmem>>, vector<1x1x32x16xf32>
    %41 = vector.shape_cast %40 : vector<1x1x32x16xf32> to vector<32x16xf32>
    %42 = vector.shape_cast %39 : vector<32x16xf32> to vector<1x1x32x16xf32>
    tpu.vector_store %arg7[%c0_36, %c2_37, %c0_38, %c0_39], %42 {strides = array<i32>} : memref<1x4x32x16xf32, #tpu.memory_space<vmem>>, vector<1x1x32x16xf32>,
    %43 = vector.extract_strided_slice %6 {offsets = [0, 48], sizes = [32, 16], strides = [1, 1]} : vector<32x192xf32> to vector<32x16xf32>
    %c0_40 = arith.constant 0 : index
    %c3 = arith.constant 3 : index
    %c0_41 = arith.constant 0 : index
    %c0_42 = arith.constant 0 : index
    %44 = vector.load %arg5[%c0_40, %c3, %c0_41, %c0_42] : memref<1x4x32x16xf32, #tpu.memory_space<vmem>>, vector<1x1x32x16xf32>
    %45 = vector.shape_cast %44 : vector<1x1x32x16xf32> to vector<32x16xf32>
    %46 = vector.shape_cast %43 : vector<32x16xf32> to vector<1x1x32x16xf32>
    tpu.vector_store %arg5[%c0_40, %c3, %c0_41, %c0_42], %46 {strides = array<i32>} : memref<1x4x32x16xf32, #tpu.memory_space<vmem>>, vector<1x1x32x16xf32>,
    %47 = vector.extract_strided_slice %6 {offsets = [0, 112], sizes = [32, 16], strides = [1, 1]} : vector<32x192xf32> to vector<32x16xf32>
    %c0_43 = arith.constant 0 : index
    %c3_44 = arith.constant 3 : index
    %c0_45 = arith.constant 0 : index
    %c0_46 = arith.constant 0 : index
    %48 = vector.load %arg6[%c0_43, %c3_44, %c0_45, %c0_46] : memref<1x4x32x16xf32, #tpu.memory_space<vmem>>, vector<1x1x32x16xf32>
    %49 = vector.shape_cast %48 : vector<1x1x32x16xf32> to vector<32x16xf32>
    %50 = vector.shape_cast %47 : vector<32x16xf32> to vector<1x1x32x16xf32>
    tpu.vector_store %arg6[%c0_43, %c3_44, %c0_45, %c0_46], %50 {strides = array<i32>} : memref<1x4x32x16xf32, #tpu.memory_space<vmem>>, vector<1x1x32x16xf32>,
    %51 = vector.extract_strided_slice %6 {offsets = [0, 176], sizes = [32, 16], strides = [1, 1]} : vector<32x192xf32> to vector<32x16xf32>
    %c0_47 = arith.constant 0 : index
    %c3_48 = arith.constant 3 : index
    %c0_49 = arith.constant 0 : index
    %c0_50 = arith.constant 0 : index
    %52 = vector.load %arg7[%c0_47, %c3_48, %c0_49, %c0_50] : memref<1x4x32x16xf32, #tpu.memory_space<vmem>>, vector<1x1x32x16xf32>
    %53 = vector.shape_cast %52 : vector<1x1x32x16xf32> to vector<32x16xf32>
    %54 = vector.shape_cast %51 : vector<32x16xf32> to vector<1x1x32x16xf32>
    tpu.vector_store %arg7[%c0_47, %c3_48, %c0_49, %c0_50], %54 {strides = array<i32>} : memref<1x4x32x16xf32, #tpu.memory_space<vmem>>, vector<1x1x32x16xf32>,
    return
  }
  func.func @transform_0(%arg0: i32, %arg1: i32) -> (i32, i32, i32) {
    %c0_i32 = arith.constant 0 : i32
    %c0_i32_0 = arith.constant 0 : i32
    return %arg0, %arg1, %c0_i32 : i32, i32, i32
  }
  func.func @transform_1(%arg0: i32, %arg1: i32) -> (i32, i32) {
    %c0_i32 = arith.constant 0 : i32
    %c0_i32_0 = arith.constant 0 : i32
    %c0_i32_1 = arith.constant 0 : i32
    return %c0_i32, %c0_i32_0 : i32, i32
  }
  func.func @transform_2(%arg0: i32, %arg1: i32) -> (i32, i32) {
    %c0_i32 = arith.constant 0 : i32
    %c0_i32_0 = arith.constant 0 : i32
    %c0_i32_1 = arith.constant 0 : i32
    return %c0_i32, %c0_i32_0 : i32, i32
  }
  func.func @transform_3(%arg0: i32, %arg1: i32) -> (i32, i32, i32, i32) {
    %c0_i32 = arith.constant 0 : i32
    %c0_i32_0 = arith.constant 0 : i32
    %c0_i32_1 = arith.constant 0 : i32
    return %arg0, %c0_i32, %arg1, %c0_i32_0 : i32, i32, i32, i32
  }
  func.func @transform_4(%arg0: i32, %arg1: i32) -> (i32, i32, i32, i32) {
    %c0_i32 = arith.constant 0 : i32
    %c0_i32_0 = arith.constant 0 : i32
    %c0_i32_1 = arith.constant 0 : i32
    return %arg0, %c0_i32, %arg1, %c0_i32_0 : i32, i32, i32, i32
  }
  func.func @transform_5(%arg0: i32, %arg1: i32) -> (i32, i32, i32, i32) {
    %c0_i32 = arith.constant 0 : i32
    %c0_i32_0 = arith.constant 0 : i32
    %c0_i32_1 = arith.constant 0 : i32
    return %arg0, %c0_i32, %arg1, %c0_i32_0 : i32, i32, i32, i32
  }
}

</mosaic_0001>

<llo_original>
// kernel: tpu_custom_call.1
$region0: #{tpu_custom_call.1}
  #allocation0 [shape = 'u32[]', space=smem, size = 0x4, offset = 0x4, fixed_abs, tag = 'smem constant byte address 0x4 - core index']
  #allocation1 [shape = 'u32[144,128]{1,0:T(1,128)}', space=vmem, size = 0x12000, scoped, tag = 'internal scratch']
  %s0 = inlined_call_operand.hbm [shape: f32[2,64,64], index: 0, kind: input, shape index: {}]
  %s1 = inlined_call_operand.hbm [shape: f32[64,192], index: 1, kind: input, shape index: {}]
  %s2 = inlined_call_operand.vmem [shape: f32[1,192], index: 2, kind: input, shape index: {}]
  %s3 = inlined_call_operand.vmem [shape: f32[2,4,64,16], index: 3, kind: output, shape index: {0}]
  %s4 = inlined_call_operand.vmem [shape: f32[2,4,64,16], index: 4, kind: output, shape index: {1}]
  %s5 = inlined_call_operand.vmem [shape: f32[2,4,64,16], index: 5, kind: output, shape index: {2}]
  %6 = xla_tuple %s3, %s4, %s5
  %s7 = sld [smem:[#allocation0]]
  $region171: #{tpu_custom_call.1} parent=0
    _
  %s9 = ssub.s32 1, %s7
  %s10 = scalar_select 0, %s9, %s7
  $region1: #{tpu_custom_call.1} parent=0
    #allocation2 [shape = 'u8[32768]{0}', space=vmem, size = 0x8000, scoped, tag = 'input window, operand 0']
    #allocation3 [shape = 's32[2]{0}', space=sflag, size = 0x8, scoped, tag = 'scoped memory for tpu_custom_call.1']
    #allocation4 [shape = 'u8[65536]{0}', space=vmem, size = 0x10000, scoped, tag = 'input window, operand 1, single buffered']
    #allocation5 [shape = 's32[1]{0}', space=sflag, size = 0x4, scoped, tag = 'scoped memory for tpu_custom_call.1']
    #allocation6 [shape = 'u8[131072]{0}', space=vmem, size = 0x20000, scoped, tag = 'output window, operand 0']
    #allocation7 [shape = 'u8[131072]{0}', space=vmem, size = 0x20000, scoped, tag = 'output window, operand 1']
    #allocation8 [shape = 'u8[131072]{0}', space=vmem, size = 0x20000, scoped, tag = 'output window, operand 2']
    %11 = vsyncpa [#allocation3], 0
    %s12 = scalar_lea.sflag [#allocation3], 1
    %13 = vsyncpa %s12, 0
    %14 = vsyncpa [#allocation5], 0
    loop: start=0, step=1, limit=6
    $region2: #{tpu_custom_call.1} parent=1 // loop_pre_header
      _
    $region3: #{tpu_custom_call.1} parent=1 // loop_header
      %s16 = sphi 0, %s20
      %p17 = scmp.ge.s32.totalorder %s16, 6
      %s23 = sphi 0, %s35
      %s24 = sphi 0, %s31
      %s25 = sphi 0, %s23
      %s26 = sphi 0, %s24
      %s27 = sphi 0, %s25
      %s28 = sphi 0, %s26
      %s40 = sphi 0, %s42
      %s43 = sphi 0, %s40
      %s44 = sphi 0, %s43
      %s60 = sphi 0, %s44
      %s64 = sphi 0, %s64
      %s66 = sphi 0, %s64
      %s67 = sphi 0, %s66
      %s81 = sphi 0, %s67
      %s85 = sphi 0, %s85
      %s87 = sphi 0, %s85
      %s88 = sphi 0, %s87
      %s102 = sphi 0, %s88
      %s110 = sphi 0, %s112
      %s113 = sphi 0, %s110
      %s114 = sphi 0, %s113
      %s130 = sphi 0, %s114
      %s138 = sphi 0, %s140
      %s141 = sphi 0, %s138
      %s142 = sphi 0, %s141
      %s158 = sphi 0, %s142
      %s166 = sphi 0, %s168
      %s169 = sphi 0, %s166
      %s170 = sphi 0, %s169
      %s186 = sphi 0, %s170
    $region4: #{tpu_custom_call.1} parent=1 // loop_header_branch
      %19 = sbr.rel (%p17) target = $region8
    $region5: #{tpu_custom_call.1} parent=1 // loop_body
      %s21 = ssub.s32 %s16, 1
      %s22 = ssub.s32 %s16, 2
      %s29 = sadd.s32 1, %s24
      %p30 = scmp.ge.s32.totalorder %s29, 2
      %s31 = scalar_select %p30, 0, %s29
      %s32 = sadd.s32 1, %s23
      %s33 = scalar_select %p30, %s32, %s23
      %p34 = scmp.ge.s32.totalorder %s33, 2
      %s35 = scalar_select %p34, 0, %s33
      %s36 = ssub.s32 %s23, %s35
      %s37 = ssub.s32 %s24, %s31
      %s38 = sor.u32 %s36, %s37
      %p39 = scmp.eq.s32.totalorder %s38, 0
      %s41 = sadd.s32 %s40, 1
      %s42 = scalar_select %p39, %s40, %s41
      %p45 = pneg %p39
      %p46 = scmp.eq.s32.totalorder %s16, 3
      %p47 = por %p45, %p46
      %p48 = scmp.ne.s32.totalorder %s40, %s43
      %p49 = scmp.eq.s32.totalorder %s16, 0
      %p50 = por %p48, %p49
      %p51 = scmp.ne.s32.totalorder %s40, %s43
      %p52 = scmp.eq.s32.totalorder %s21, 3
      %p53 = por %p51, %p52
      %p54 = scmp.ne.s32.totalorder %s43, %s44
      %p55 = scmp.eq.s32.totalorder %s21, 0
      %p56 = por %p54, %p55
      %p57 = scmp.ne.s32.totalorder %s43, %s44
      %p58 = scmp.eq.s32.totalorder %s22, 3
      %p59 = por %p57, %p58
      %p61 = scmp.ne.s32.totalorder %s44, %s60
      %p62 = scmp.eq.s32.totalorder %s22, 0
      %p63 = por %p61, %p62
      %s65 = sadd.s32 %s64, 1
      %p68 = scmp.eq.s32.totalorder %s16, 3
      %p69 = scmp.ne.s32.totalorder %s64, %s66
      %p70 = scmp.eq.s32.totalorder %s16, 0
      %p71 = por %p69, %p70
      %p72 = scmp.ne.s32.totalorder %s64, %s66
      %p73 = scmp.eq.s32.totalorder %s21, 3
      %p74 = por %p72, %p73
      %p75 = scmp.ne.s32.totalorder %s66, %s67
      %p76 = scmp.eq.s32.totalorder %s21, 0
      %p77 = por %p75, %p76
      %p78 = scmp.ne.s32.totalorder %s66, %s67
      %p79 = scmp.eq.s32.totalorder %s22, 3
      %p80 = por %p78, %p79
      %p82 = scmp.ne.s32.totalorder %s67, %s81
      %p83 = scmp.eq.s32.totalorder %s22, 0
      %p84 = por %p82, %p83
      %s86 = sadd.s32 %s85, 1
      %p89 = scmp.eq.s32.totalorder %s16, 3
      %p90 = scmp.ne.s32.totalorder %s85, %s87
      %p91 = scmp.eq.s32.totalorder %s16, 0
      %p92 = por %p90, %p91
      %p93 = scmp.ne.s32.totalorder %s85, %s87
      %p94 = scmp.eq.s32.totalorder %s21, 3
      %p95 = por %p93, %p94
      %p96 = scmp.ne.s32.totalorder %s87, %s88
      %p97 = scmp.eq.s32.totalorder %s21, 0
      %p98 = por %p96, %p97
      %p99 = scmp.ne.s32.totalorder %s87, %s88
      %p100 = scmp.eq.s32.totalorder %s22, 3
      %p101 = por %p99, %p100
      %p103 = scmp.ne.s32.totalorder %s88, %s102
      %p104 = scmp.eq.s32.totalorder %s22, 0
      %p105 = por %p103, %p104
      %s106 = ssub.s32 %s23, %s35
      %s107 = ssub.s32 %s24, %s31
      %s108 = sor.u32 %s106, %s107
      %p109 = scmp.eq.s32.totalorder %s108, 0
      %s111 = sadd.s32 %s110, 1
      %s112 = scalar_select %p109, %s110, %s111
      %p115 = pneg %p109
      %p116 = scmp.eq.s32.totalorder %s16, 3
      %p117 = por %p115, %p116
      %p118 = scmp.ne.s32.totalorder %s110, %s113
      %p119 = scmp.eq.s32.totalorder %s16, 0
      %p120 = por %p118, %p119
      %p121 = scmp.ne.s32.totalorder %s110, %s113
      %p122 = scmp.eq.s32.totalorder %s21, 3
      %p123 = por %p121, %p122
      %p124 = scmp.ne.s32.totalorder %s113, %s114
      %p125 = scmp.eq.s32.totalorder %s21, 0
      %p126 = por %p124, %p125
      %p127 = scmp.ne.s32.totalorder %s113, %s114
      %p128 = scmp.eq.s32.totalorder %s22, 3
      %p129 = por %p127, %p128
      %p131 = scmp.ne.s32.totalorder %s114, %s130
      %p132 = scmp.eq.s32.totalorder %s22, 0
      %p133 = por %p131, %p132
      %s134 = ssub.s32 %s23, %s35
      %s135 = ssub.s32 %s24, %s31
      %s136 = sor.u32 %s134, %s135
      %p137 = scmp.eq.s32.totalorder %s136, 0
      %s139 = sadd.s32 %s138, 1
      %s140 = scalar_select %p137, %s138, %s139
      %p143 = pneg %p137
      %p144 = scmp.eq.s32.totalorder %s16, 3
      %p145 = por %p143, %p144
      %p146 = scmp.ne.s32.totalorder %s138, %s141
      %p147 = scmp.eq.s32.totalorder %s16, 0
      %p148 = por %p146, %p147
      %p149 = scmp.ne.s32.totalorder %s138, %s141
      %p150 = scmp.eq.s32.totalorder %s21, 3
      %p151 = por %p149, %p150
      %p152 = scmp.ne.s32.totalorder %s141, %s142
      %p153 = scmp.eq.s32.totalorder %s21, 0
      %p154 = por %p152, %p153
      %p155 = scmp.ne.s32.totalorder %s141, %s142
      %p156 = scmp.eq.s32.totalorder %s22, 3
      %p157 = por %p155, %p156
      %p159 = scmp.ne.s32.totalorder %s142, %s158
      %p160 = scmp.eq.s32.totalorder %s22, 0
      %p161 = por %p159, %p160
      %s162 = ssub.s32 %s23, %s35
      %s163 = ssub.s32 %s24, %s31
      %s164 = sor.u32 %s162, %s163
      %p165 = scmp.eq.s32.totalorder %s164, 0
      %s167 = sadd.s32 %s166, 1
      %s168 = scalar_select %p165, %s166, %s167
      %p171 = pneg %p165
      %p172 = scmp.eq.s32.totalorder %s16, 3
      %p173 = por %p171, %p172
      %p174 = scmp.ne.s32.totalorder %s166, %s169
      %p175 = scmp.eq.s32.totalorder %s16, 0
      %p176 = por %p174, %p175
      %p177 = scmp.ne.s32.totalorder %s166, %s169
      %p178 = scmp.eq.s32.totalorder %s21, 3
      %p179 = por %p177, %p178
      %p180 = scmp.ne.s32.totalorder %s169, %s170
      %p181 = scmp.eq.s32.totalorder %s21, 0
      %p182 = por %p180, %p181
      %p183 = scmp.ne.s32.totalorder %s169, %s170
      %p184 = scmp.eq.s32.totalorder %s22, 3
      %p185 = por %p183, %p184
      %p187 = scmp.ne.s32.totalorder %s170, %s186
      %p188 = scmp.eq.s32.totalorder %s22, 0
      %p189 = por %p187, %p188
      %p190 = scmp.le.s32.totalorder 1, %s16
      %p191 = scmp.lt.s32.totalorder %s16, 5
      %p192 = pnand %p190, %p191
      %p193 = pneg %p192
      // Predicated region
      $region9: #{tpu_custom_call.1} parent=5 // pred_check
        _
      $region10: #{tpu_custom_call.1} parent=5 // pred_check_branch
        %195 = sbr.rel (%p192) target = $region12
      $region11: #{tpu_custom_call.1} parent=5 // pred_region
        %s196 = ssub.s32 %s16, 1
        // Predicated region
        $region13: #{tpu_custom_call.1} parent=11 // pred_check
          %p197 = pneg %p77
        $region14: #{tpu_custom_call.1} parent=11 // pred_check_branch
          %199 = sbr.rel (%p197) target = $region16
        $region15: #{tpu_custom_call.1} parent=11 // pred_region
          %s201 = ssub.s32 2048, 2048
          %202 = vsyncadd [#allocation5], %s201
          %s203 = sshll.u32 [#allocation4], 4
          %s204 = int_to_ptr.vmem [resolvable:$true] %s203
          %209 = dma.hbm_to_vmem [thread:$0]  %s1, 2048, %s204, [#allocation5], 256, 256, 16
        $region16: #{tpu_custom_call.1} parent=11 // pred_fallthru
          _
        // Predicated region
        $region17: #{tpu_custom_call.1} parent=11 // pred_check
          %p210 = pneg %p98
        $region18: #{tpu_custom_call.1} parent=11 // pred_check_branch
          %212 = sbr.rel (%p210) target = $region20
        $region19: #{tpu_custom_call.1} parent=11 // pred_region
          _
        $region20: #{tpu_custom_call.1} parent=11 // pred_fallthru
          _
      $region12: #{tpu_custom_call.1} parent=5 // pred_fallthru
        _
      %p213 = scmp.lt.s32.totalorder %s16, 4
      // Predicated region
      $region21: #{tpu_custom_call.1} parent=5 // pred_check
        %p214 = pneg %p213
      $region22: #{tpu_custom_call.1} parent=5 // pred_check_branch
        %216 = sbr.rel (%p214) target = $region24
      $region23: #{tpu_custom_call.1} parent=5 // pred_region
        // Predicated region
        $region25: #{tpu_custom_call.1} parent=23 // pred_check
          %p217 = pneg %p50
        $region26: #{tpu_custom_call.1} parent=23 // pred_check_branch
          %219 = sbr.rel (%p217) target = $region28
        $region27: #{tpu_custom_call.1} parent=23 // pred_region
          %s220 = sand.u32 %s40, 1
          %s221 = scalar_lea.sflag [#allocation3], %s220
          %s222 = sand.u32 %s40, 1
          %s223 = smul.addr %s222, 32
          %s224 = scalar_lea.vmem [#allocation2], %s223
          %s225 = smul.u32 4, %s24
          %s227 = ssub.s32 512, 512
          %228 = vsyncadd %s221, %s227
          %s229 = smul.addr %s23, 8
          %s230 = sadd.s32 %s225, %s229
          %s231 = smul.addr %s230, 128
          %s232 = scalar_lea.hbm %s0, %s231
          %s233 = sshll.u32 %s224, 4
          %s234 = int_to_ptr.vmem [resolvable:$true] %s233
          %239 = dma.hbm_to_vmem [thread:$0]  %s232, 512, %s234, %s221, 128, 128, 8
        $region28: #{tpu_custom_call.1} parent=23 // pred_fallthru
          _
      $region24: #{tpu_custom_call.1} parent=5 // pred_fallthru
        _
      %p240 = scmp.le.s32.totalorder 1, %s16
      %p241 = scmp.lt.s32.totalorder %s16, 5
      %p242 = pnand %p240, %p241
      %p243 = pneg %p242
      // Predicated region
      $region29: #{tpu_custom_call.1} parent=5 // pred_check
        _
      $region30: #{tpu_custom_call.1} parent=5 // pred_check_branch
        %245 = sbr.rel (%p242) target = $region32
      $region31: #{tpu_custom_call.1} parent=5 // pred_region
        %s246 = ssub.s32 %s16, 1
        %s247 = sand.u32 %s43, 1
        %s248 = scalar_lea.sflag [#allocation3], %s247
        %s249 = sand.u32 %s43, 1
        %s250 = smul.addr %s249, 32
        %s251 = scalar_lea.vmem [#allocation2], %s250
        // Predicated region
        $region33: #{tpu_custom_call.1} parent=31 // pred_check
          %p252 = pneg %p56
        $region34: #{tpu_custom_call.1} parent=31 // pred_check_branch
          %254 = sbr.rel (%p252) target = $region36
        $region35: #{tpu_custom_call.1} parent=31 // pred_region
          %255 = dma.done %s248, 512
        $region36: #{tpu_custom_call.1} parent=31 // pred_fallthru
          _
        // Predicated region
        $region37: #{tpu_custom_call.1} parent=31 // pred_check
          %p256 = pneg %p77
        $region38: #{tpu_custom_call.1} parent=31 // pred_check_branch
          %258 = sbr.rel (%p256) target = $region40
        $region39: #{tpu_custom_call.1} parent=31 // pred_region
          %259 = dma.done [#allocation5], 2048
        $region40: #{tpu_custom_call.1} parent=31 // pred_fallthru
          _
        %s260 = sand.u32 %s43, 1
        %s261 = scalar_lea.sflag [#allocation3], %s260
        %s262 = sand.u32 %s43, 1
        %s263 = smul.addr %s262, 32
        %s264 = scalar_lea.vmem [#allocation2], %s263
        %p265 = pneg %p56
        %p266 = pneg %p53
        %p267 = pneg %p77
        %p268 = pneg %p74
        %p269 = pneg %p98
        %p270 = pneg %p95
        %p271 = pneg %p126
        %p272 = pneg %p123
        %s273 = sand.u32 %s113, 1
        %s274 = sand.u32 %s113, 1
        %s275 = smul.addr %s274, 128
        %s276 = scalar_lea.vmem [#allocation6], %s275
        %p277 = pneg %p154
        %p278 = pneg %p151
        %s279 = sand.u32 %s141, 1
        %s280 = sand.u32 %s141, 1
        %s281 = smul.addr %s280, 128
        %s282 = scalar_lea.vmem [#allocation7], %s281
        %p283 = pneg %p182
        %p284 = pneg %p179
        %s285 = sand.u32 %s169, 1
        %s286 = sand.u32 %s169, 1
        %s287 = smul.addr %s286, 128
        %s288 = scalar_lea.vmem [#allocation8], %s287
        %s289 = smul.u32 4, %s26
        %s290 = smul.u32 4, %s26
        %s291 = smul.u32 4, %s26
        %s292 = smul.u32 4, %s26
        %v293 = vld [vmem:[%s251] sm:$0xff]
        %v294 = vld [vmem:[%s251 + $0x8] sm:$0xff]
        %v295 = vld [vmem:[%s251 + $0x10] sm:$0xff]
        %v296 = vld [vmem:[%s251 + $0x18] sm:$0xff]
        %v297 = vld [vmem:[#allocation4] sm:$0xff]
        %v298 = vld [vmem:[#allocation4 + $0x8] sm:$0xff]
        %v299 = vld [vmem:[#allocation4 + $0x10] sm:$0xff]
        %v300 = vld [vmem:[#allocation4 + $0x18] sm:$0xff]
        %v301 = vld [vmem:[#allocation4 + $0x20] sm:$0xff]
        %v302 = vld [vmem:[#allocation4 + $0x28] sm:$0xff]
        %v303 = vld [vmem:[#allocation4 + $0x30] sm:$0xff]
        %v304 = vld [vmem:[#allocation4 + $0x38] sm:$0xff]
        %v305 = vld [vmem:[#allocation4 + $0x40] sm:$0xff]
        %v306 = vld [vmem:[#allocation4 + $0x48] sm:$0xff]
        %v307 = vld [vmem:[#allocation4 + $0x50] sm:$0xff]
        %v308 = vld [vmem:[#allocation4 + $0x58] sm:$0xff]
        %v309 = vld [vmem:[#allocation4 + $0x60] sm:$0xff]
        %v310 = vld [vmem:[#allocation4 + $0x68] sm:$0xff]
        %v311 = vld [vmem:[#allocation4 + $0x70] sm:$0xff]
        %v312 = vld [vmem:[#allocation4 + $0x78] sm:$0xff]
        %v313 = vld [vmem:[%s2] sm:$0x3]
        %v315 = vlaneseq
        %v316 = vshrl.u32 %v315, 7
        %v317 = vsub.s32 0, %v316
        %v318 = vrot.slane %v313, %v317
        %v319 = vlaneseq
        %v320 = vshrl.u32 %v319, 7
        %v321 = vsub.s32 1, %v320
        %v322 = vrot.slane %v313, %v321
        %vm325 = vcmask 523264
        %v327 = vsel %vm325, %v293, 0
        %v330 = vsel %vm325, %v294, 0
        %v333 = vsel %vm325, %v295, 0
        %v336 = vsel %vm325, %v296, 0
        %338 = vmatprep.subr.mxu0 0.0
        %339 = vmatpush1.msra.mxu0 0.0
        %340 = vmatprep.subr.mxu0 0.0
        %341 = vmatpush1.msra.mxu0 0.0
        %342 = vmatprep.subr.mxu0 0.0
        %343 = vmatpush1.msra.mxu0 0.0
        %344 = vmatprep.subr.mxu0 0.0
        %345 = vmatpush1.msra.mxu0 0.0
        %346 = vmatprep.subr.mxu0 0.0
        %347 = vmatpush1.msra.mxu0 0.0
        %348 = vmatprep.subr.mxu0 0.0
        %349 = vmatpush1.msra.mxu0 0.0
        %350 = vmatprep.subr.mxu0 0.0
        %351 = vmatpush1.msra.mxu0 0.0
        %352 = vmatprep.subr.mxu0 0.0
        %353 = vmatpush1.msra.mxu0 0.0
        %354 = vmatprep.subr.mxu0 %v312
        %355 = vmatpush1.msra.mxu0 %v311
        %356 = vmatprep.subr.mxu0 %v310
        %357 = vmatpush1.msra.mxu0 %v309
        %358 = vmatprep.subr.mxu0 %v308
        %359 = vmatpush1.msra.mxu0 %v307
        %360 = vmatprep.subr.mxu0 %v306
        %361 = vmatpush1.msra.mxu0 %v305
        %362 = vmatprep.subr.mxu0 %v304
        %363 = vmatpush1.msra.mxu0 %v303
        %364 = vmatprep.subr.mxu0 %v302
        %365 = vmatpush1.msra.mxu0 %v301
        %366 = vmatprep.subr.mxu0 %v300
        %367 = vmatpush1.msra.mxu0 %v299
        %368 = vmatprep.subr.mxu0 %v298
        %369 = vmatpush1.msra.mxu0 %v297
        %370 = vmatprep.subr.mxu0 0.0
        %371 = vmatpush2.msra.mxu0 0.0
        %372 = vmatprep.subr.mxu0 0.0
        %373 = vmatpush2.msra.mxu0 0.0
        %374 = vmatprep.subr.mxu0 0.0
        %375 = vmatpush2.msra.mxu0 0.0
        %376 = vmatprep.subr.mxu0 0.0
        %377 = vmatpush2.msra.mxu0 0.0
        %378 = vmatprep.subr.mxu0 0.0
        %379 = vmatpush2.msra.mxu0 0.0
        %380 = vmatprep.subr.mxu0 0.0
        %381 = vmatpush2.msra.mxu0 0.0
        %382 = vmatprep.subr.mxu0 0.0
        %383 = vmatpush2.msra.mxu0 0.0
        %384 = vmatprep.subr.mxu0 0.0
        %385 = vmatpush2.msra.mxu0 0.0
        %386 = vmatprep.subr.mxu0 0.0
        %387 = vmatpush2.msra.mxu0 0.0
        %388 = vmatprep.subr.mxu0 0.0
        %389 = vmatpush2.msra.mxu0 0.0
        %390 = vmatprep.subr.mxu0 0.0
        %391 = vmatpush2.msra.mxu0 0.0
        %392 = vmatprep.subr.mxu0 0.0
        %393 = vmatpush2.msra.mxu0 0.0
        %394 = vmatprep.subr.mxu0 0.0
        %395 = vmatpush2.msra.mxu0 0.0
        %396 = vmatprep.subr.mxu0 0.0
        %397 = vmatpush2.msra.mxu0 0.0
        %398 = vmatprep.subr.mxu0 0.0
        %399 = vmatpush2.msra.mxu0 0.0
        %400 = vmatprep.subr.mxu0 0.0
        %401 = vmatpush2.msra.mxu0 0.0
        %402 = vmatprep.mubr.f32.mxu0 0.0
        %403 = vmatmul.mubr.f32.gmra.mxu0 %v327
        %v404 = vpop.f32.mrf.mxu0
        %v405 = vadd.f32 %v318, %v404
        %v406 = vpop.f32.mrf.mxu0
        %v407 = vadd.f32 %v322, %v406
        %408 = vmatprep.mubr.f32.mxu0 0.0
        %409 = vmatmul.mubr.f32.gmra.mxu0 %v330
        %v410 = vpop.f32.mrf.mxu0
        %v411 = vadd.f32 %v318, %v410
        %v412 = vpop.f32.mrf.mxu0
        %v413 = vadd.f32 %v322, %v412
        %414 = vmatprep.mubr.f32.mxu0 0.0
        %415 = vmatmul.mubr.f32.gmra.mxu0 %v333
        %v416 = vpop.f32.mrf.mxu0
        %v417 = vadd.f32 %v318, %v416
        %v418 = vpop.f32.mrf.mxu0
        %v419 = vadd.f32 %v322, %v418
        %420 = vmatprep.mubr.f32.mxu0 0.0
        %421 = vmatmul.mubr.f32.gmra.mxu0 %v336
        %v422 = vpop.f32.mrf.mxu0
        %v423 = vadd.f32 %v318, %v422
        %v424 = vpop.f32.mrf.mxu0
        %v425 = vadd.f32 %v322, %v424
        %426 = vdwg.mxu0
        %vm427 = vcmask 130048
        %428 = vst.msk [vmem:[%s276] sm:$0xff] %vm427, %v405
        %429 = vst.msk [vmem:[%s276 + $0x8] sm:$0xff] %vm427, %v411
        %430 = vst.msk [vmem:[%s276 + $0x10] sm:$0xff] %vm427, %v417
        %431 = vst.msk [vmem:[%s276 + $0x18] sm:$0xff] %vm427, %v423
        %436 = vrot.lane.b32.xlu0 %v405, 64
        %v437 = vpop.permute.xlu0 %436
        %438 = vrot.lane.b32.xlu0 %v411, 64
        %v439 = vpop.permute.xlu0 %438
        %440 = vrot.lane.b32.xlu0 %v417, 64
        %v441 = vpop.permute.xlu0 %440
        %442 = vrot.lane.b32.xlu0 %v423, 64
        %v443 = vpop.permute.xlu0 %442
        %448 = vst.msk [vmem:[%s282] sm:$0xff] %vm427, %v437
        %449 = vst.msk [vmem:[%s282 + $0x8] sm:$0xff] %vm427, %v439
        %450 = vst.msk [vmem:[%s282 + $0x10] sm:$0xff] %vm427, %v441
        %451 = vst.msk [vmem:[%s282 + $0x18] sm:$0xff] %vm427, %v443
        %452 = vst.msk [vmem:[%s288] sm:$0xff] %vm427, %v407
        %453 = vst.msk [vmem:[%s288 + $0x8] sm:$0xff] %vm427, %v413
        %454 = vst.msk [vmem:[%s288 + $0x10] sm:$0xff] %vm427, %v419
        %455 = vst.msk [vmem:[%s288 + $0x18] sm:$0xff] %vm427, %v425
        %456 = vrot.lane.b32.xlu0 %v405, 112
        %v457 = vpop.permute.xlu0 %456
        %458 = vrot.lane.b32.xlu0 %v411, 112
        %v459 = vpop.permute.xlu0 %458
        %460 = vrot.lane.b32.xlu0 %v417, 112
        %v461 = vpop.permute.xlu0 %460
        %462 = vrot.lane.b32.xlu0 %v423, 112
        %v463 = vpop.permute.xlu0 %462
        %s468 = scalar_lea.vmem %s276, 32 [#allocation6]
        %469 = vst.msk [vmem:[%s468] sm:$0xff] %vm427, %v457
        %470 = vst.msk [vmem:[%s468 + $0x8] sm:$0xff] %vm427, %v459
        %471 = vst.msk [vmem:[%s468 + $0x10] sm:$0xff] %vm427, %v461
        %472 = vst.msk [vmem:[%s468 + $0x18] sm:$0xff] %vm427, %v463
        %473 = vrot.lane.b32.xlu0 %v405, 48
        %v474 = vpop.permute.xlu0 %473
        %475 = vrot.lane.b32.xlu0 %v411, 48
        %v476 = vpop.permute.xlu0 %475
        %477 = vrot.lane.b32.xlu0 %v417, 48
        %v478 = vpop.permute.xlu0 %477
        %479 = vrot.lane.b32.xlu0 %v423, 48
        %v480 = vpop.permute.xlu0 %479
        %s485 = scalar_lea.vmem %s282, 32 [#allocation7]
        %486 = vst.msk [vmem:[%s485] sm:$0xff] %vm427, %v474
        %487 = vst.msk [vmem:[%s485 + $0x8] sm:$0xff] %vm427, %v476
        %488 = vst.msk [vmem:[%s485 + $0x10] sm:$0xff] %vm427, %v478
        %489 = vst.msk [vmem:[%s485 + $0x18] sm:$0xff] %vm427, %v480
        %494 = vrot.lane.b32.xlu0 %v407, 112
        %v495 = vpop.permute.xlu0 %494
        %496 = vrot.lane.b32.xlu0 %v413, 112
        %v497 = vpop.permute.xlu0 %496
        %498 = vrot.lane.b32.xlu0 %v419, 112
        %v499 = vpop.permute.xlu0 %498
        %500 = vrot.lane.b32.xlu0 %v425, 112
        %v501 = vpop.permute.xlu0 %500
        %s506 = scalar_lea.vmem %s288, 32 [#allocation8]
        %507 = vst.msk [vmem:[%s506] sm:$0xff] %vm427, %v495
        %508 = vst.msk [vmem:[%s506 + $0x8] sm:$0xff] %vm427, %v497
        %509 = vst.msk [vmem:[%s506 + $0x10] sm:$0xff] %vm427, %v499
        %510 = vst.msk [vmem:[%s506 + $0x18] sm:$0xff] %vm427, %v501
        %511 = vrot.lane.b32.xlu0 %v405, 96
        %v512 = vpop.permute.xlu0 %511
        %513 = vrot.lane.b32.xlu0 %v411, 96
        %v514 = vpop.permute.xlu0 %513
        %515 = vrot.lane.b32.xlu0 %v417, 96
        %v516 = vpop.permute.xlu0 %515
        %517 = vrot.lane.b32.xlu0 %v423, 96
        %v518 = vpop.permute.xlu0 %517
        %s523 = scalar_lea.vmem %s276, 64 [#allocation6]
        %524 = vst.msk [vmem:[%s523] sm:$0xff] %vm427, %v512
        %525 = vst.msk [vmem:[%s523 + $0x8] sm:$0xff] %vm427, %v514
        %526 = vst.msk [vmem:[%s523 + $0x10] sm:$0xff] %vm427, %v516
        %527 = vst.msk [vmem:[%s523 + $0x18] sm:$0xff] %vm427, %v518
        %528 = vrot.lane.b32.xlu0 %v405, 32
        %v529 = vpop.permute.xlu0 %528
        %530 = vrot.lane.b32.xlu0 %v411, 32
        %v531 = vpop.permute.xlu0 %530
        %532 = vrot.lane.b32.xlu0 %v417, 32
        %v533 = vpop.permute.xlu0 %532
        %534 = vrot.lane.b32.xlu0 %v423, 32
        %v535 = vpop.permute.xlu0 %534
        %s540 = scalar_lea.vmem %s282, 64 [#allocation7]
        %541 = vst.msk [vmem:[%s540] sm:$0xff] %vm427, %v529
        %542 = vst.msk [vmem:[%s540 + $0x8] sm:$0xff] %vm427, %v531
        %543 = vst.msk [vmem:[%s540 + $0x10] sm:$0xff] %vm427, %v533
        %544 = vst.msk [vmem:[%s540 + $0x18] sm:$0xff] %vm427, %v535
        %545 = vrot.lane.b32.xlu0 %v407, 96
        %v546 = vpop.permute.xlu0 %545
        %547 = vrot.lane.b32.xlu0 %v413, 96
        %v548 = vpop.permute.xlu0 %547
        %549 = vrot.lane.b32.xlu0 %v419, 96
        %v550 = vpop.permute.xlu0 %549
        %551 = vrot.lane.b32.xlu0 %v425, 96
        %v552 = vpop.permute.xlu0 %551
        %s557 = scalar_lea.vmem %s288, 64 [#allocation8]
        %558 = vst.msk [vmem:[%s557] sm:$0xff] %vm427, %v546
        %559 = vst.msk [vmem:[%s557 + $0x8] sm:$0xff] %vm427, %v548
        %560 = vst.msk [vmem:[%s557 + $0x10] sm:$0xff] %vm427, %v550
        %561 = vst.msk [vmem:[%s557 + $0x18] sm:$0xff] %vm427, %v552
        %562 = vrot.lane.b32.xlu0 %v405, 80
        %v563 = vpop.permute.xlu0 %562
        %564 = vrot.lane.b32.xlu0 %v411, 80
        %v565 = vpop.permute.xlu0 %564
        %566 = vrot.lane.b32.xlu0 %v417, 80
        %v567 = vpop.permute.xlu0 %566
        %568 = vrot.lane.b32.xlu0 %v423, 80
        %v569 = vpop.permute.xlu0 %568
        %s574 = scalar_lea.vmem %s276, 96 [#allocation6]
        %575 = vst.msk [vmem:[%s574] sm:$0xff] %vm427, %v563
        %576 = vst.msk [vmem:[%s574 + $0x8] sm:$0xff] %vm427, %v565
        %577 = vst.msk [vmem:[%s574 + $0x10] sm:$0xff] %vm427, %v567
        %578 = vst.msk [vmem:[%s574 + $0x18] sm:$0xff] %vm427, %v569
        %579 = vrot.lane.b32.xlu0 %v405, 16
        %v580 = vpop.permute.xlu0 %579
        %581 = vrot.lane.b32.xlu0 %v411, 16
        %v582 = vpop.permute.xlu0 %581
        %583 = vrot.lane.b32.xlu0 %v417, 16
        %v584 = vpop.permute.xlu0 %583
        %585 = vrot.lane.b32.xlu0 %v423, 16
        %v586 = vpop.permute.xlu0 %585
        %s591 = scalar_lea.vmem %s282, 96 [#allocation7]
        %592 = vst.msk [vmem:[%s591] sm:$0xff] %vm427, %v580
        %593 = vst.msk [vmem:[%s591 + $0x8] sm:$0xff] %vm427, %v582
        %594 = vst.msk [vmem:[%s591 + $0x10] sm:$0xff] %vm427, %v584
        %595 = vst.msk [vmem:[%s591 + $0x18] sm:$0xff] %vm427, %v586
        %596 = vrot.lane.b32.xlu0 %v407, 80
        %v597 = vpop.permute.xlu0 %596
        %598 = vrot.lane.b32.xlu0 %v413, 80
        %v599 = vpop.permute.xlu0 %598
        %600 = vrot.lane.b32.xlu0 %v419, 80
        %v601 = vpop.permute.xlu0 %600
        %602 = vrot.lane.b32.xlu0 %v425, 80
        %v603 = vpop.permute.xlu0 %602
        %s608 = scalar_lea.vmem %s288, 96 [#allocation8]
        %609 = vst.msk [vmem:[%s608] sm:$0xff] %vm427, %v597
        %610 = vst.msk [vmem:[%s608 + $0x8] sm:$0xff] %vm427, %v599
        %611 = vst.msk [vmem:[%s608 + $0x10] sm:$0xff] %vm427, %v601
        %612 = vst.msk [vmem:[%s608 + $0x18] sm:$0xff] %vm427, %v603
        %s613 = sand.u32 %s113, 1
        %s614 = sand.u32 %s113, 1
        %s615 = smul.addr %s614, 128
        %s616 = scalar_lea.vmem [#allocation6], %s615
        %s617 = sand.u32 %s141, 1
        %s618 = sand.u32 %s141, 1
        %s619 = smul.addr %s618, 128
        %s620 = scalar_lea.vmem [#allocation7], %s619
        %s621 = sand.u32 %s169, 1
        %s622 = sand.u32 %s169, 1
        %s623 = smul.addr %s622, 128
        %s624 = scalar_lea.vmem [#allocation8], %s623
        // Predicated region
        $region41: #{tpu_custom_call.1} parent=31 // pred_check
          %p625 = pneg %p123
        $region42: #{tpu_custom_call.1} parent=31 // pred_check_branch
          %627 = sbr.rel (%p625) target = $region44
        $region43: #{tpu_custom_call.1} parent=31 // pred_region
          %s628 = smul.u32 4, %s26
          %s629 = smul.addr %s25, 32
          %s630 = sadd.s32 %s628, %s629
          %s631 = smul.addr %s630, 8
          %s632 = scalar_lea.vmem %s3, %s631
          // Predicated region
          $region45: #{tpu_custom_call.1} parent=43 // pred_check
            _
          $region46: #{tpu_custom_call.1} parent=43 // pred_check_branch
            %634 = sbr.rel (0) target = $region48
          $region47: #{tpu_custom_call.1} parent=43 // pred_region
            // Predicated region
            $region49: #{tpu_custom_call.1} parent=47 // pred_check
              _
            $region50: #{tpu_custom_call.1} parent=47 // pred_check_branch
              %636 = sbr.rel (0) target = $region52
            $region51: #{tpu_custom_call.1} parent=47 // pred_region
              // Predicated region
              $region64: #{tpu_custom_call.1} parent=51 // pred_check
                _
              $region65: #{tpu_custom_call.1} parent=51 // pred_check_branch
                %682 = sbr.rel (0) target = $region67
              $region66: #{tpu_custom_call.1} parent=51 // pred_region
                loop: start=0, step=1, limit=1
                $region68: #{tpu_custom_call.1} parent=66 // loop_pre_header
                  _
                $region69: #{tpu_custom_call.1} parent=66 // loop_header
                  %s684 = sphi 0, %s688
                  %p685 = scmp.ge.s32.totalorder %s684, 1
                  %s689 = sphi %s616, %s616
                  %s690 = sphi %s632, %s632
                $region70: #{tpu_custom_call.1} parent=66 // loop_header_branch
                  %687 = sbr.rel (%p685) target = $region74
                $region71: #{tpu_custom_call.1} parent=66 // loop_body
                  %v691 = vld [vmem:[%s689] sm:$0xff]
                  %692 = vst [vmem:[%s690] sm:$0xff] %v691
                  %v693 = vld [vmem:[%s689 + $0x8] sm:$0xff]
                  %694 = vst [vmem:[%s690 + $0x8] sm:$0xff] %v693
                  %v695 = vld [vmem:[%s689 + $0x10] sm:$0xff]
                  %696 = vst [vmem:[%s690 + $0x10] sm:$0xff] %v695
                  %v697 = vld [vmem:[%s689 + $0x18] sm:$0xff]
                  %698 = vst [vmem:[%s690 + $0x18] sm:$0xff] %v697
                  %v699 = vld [vmem:[%s689 + $0x20] sm:$0xff]
                  %700 = vst [vmem:[%s690 + $0x40] sm:$0xff] %v699
                  %v701 = vld [vmem:[%s689 + $0x28] sm:$0xff]
                  %702 = vst [vmem:[%s690 + $0x48] sm:$0xff] %v701
                  %v703 = vld [vmem:[%s689 + $0x30] sm:$0xff]
                  %704 = vst [vmem:[%s690 + $0x50] sm:$0xff] %v703
                  %v705 = vld [vmem:[%s689 + $0x38] sm:$0xff]
                  %706 = vst [vmem:[%s690 + $0x58] sm:$0xff] %v705
                  %v707 = vld [vmem:[%s689 + $0x40] sm:$0xff]
                  %708 = vst [vmem:[%s690 + $0x80] sm:$0xff] %v707
                  %v709 = vld [vmem:[%s689 + $0x48] sm:$0xff]
                  %710 = vst [vmem:[%s690 + $0x88] sm:$0xff] %v709
                  %v711 = vld [vmem:[%s689 + $0x50] sm:$0xff]
                  %712 = vst [vmem:[%s690 + $0x90] sm:$0xff] %v711
                  %v713 = vld [vmem:[%s689 + $0x58] sm:$0xff]
                  %714 = vst [vmem:[%s690 + $0x98] sm:$0xff] %v713
                  %v715 = vld [vmem:[%s689 + $0x60] sm:$0xff]
                  %716 = vst [vmem:[%s690 + $0xc0] sm:$0xff] %v715
                  %v717 = vld [vmem:[%s689 + $0x68] sm:$0xff]
                  %718 = vst [vmem:[%s690 + $0xc8] sm:$0xff] %v717
                  %v719 = vld [vmem:[%s689 + $0x70] sm:$0xff]
                  %720 = vst [vmem:[%s690 + $0xd0] sm:$0xff] %v719
                  %v721 = vld [vmem:[%s689 + $0x78] sm:$0xff]
                  %722 = vst [vmem:[%s690 + $0xd8] sm:$0xff] %v721
                $region72: #{tpu_custom_call.1} parent=66 // loop_footer
                  %s688 = sadd.s32 1, %s684
                $region73: #{tpu_custom_call.1} parent=66 // loop_footer_branch
                  %683 = sbr.rel target = $region69
                $region74: #{tpu_custom_call.1} parent=66 // loop_exit
                  _
              $region67: #{tpu_custom_call.1} parent=51 // pred_fallthru
                _
              // Predicated region
              $region75: #{tpu_custom_call.1} parent=51 // pred_check
                _
              $region76: #{tpu_custom_call.1} parent=51 // pred_check_branch
                %724 = sbr.rel target = $region78
              $region77: #{tpu_custom_call.1} parent=51 // pred_region
                _
              $region78: #{tpu_custom_call.1} parent=51 // pred_fallthru
                _
            $region52: #{tpu_custom_call.1} parent=47 // pred_fallthru
              _
            // Predicated region
            $region53: #{tpu_custom_call.1} parent=47 // pred_check
              _
            $region54: #{tpu_custom_call.1} parent=47 // pred_check_branch
              %638 = sbr.rel target = $region56
            $region55: #{tpu_custom_call.1} parent=47 // pred_region
              %s640 = ssub.s32 256, 1
              loop: start=0, step=1, limit=1
              $region57: #{tpu_custom_call.1} parent=55 // loop_pre_header
                _
              $region58: #{tpu_custom_call.1} parent=55 // loop_header
                %s642 = sphi 0, %s646
                %p643 = scmp.ge.s32.totalorder %s642, 1
                %s647 = sphi %s616, %s616
                %s648 = sphi %s632, %s632
              $region59: #{tpu_custom_call.1} parent=55 // loop_header_branch
                %645 = sbr.rel (%p643) target = $region63
              $region60: #{tpu_custom_call.1} parent=55 // loop_body
                %v649 = vld [vmem:[%s647] sm:%s640]
                %650 = vst [vmem:[%s648] sm:%s640] %v649
                %v651 = vld [vmem:[%s647 + $0x8] sm:%s640]
                %652 = vst [vmem:[%s648 + $0x8] sm:%s640] %v651
                %v653 = vld [vmem:[%s647 + $0x10] sm:%s640]
                %654 = vst [vmem:[%s648 + $0x10] sm:%s640] %v653
                %v655 = vld [vmem:[%s647 + $0x18] sm:%s640]
                %656 = vst [vmem:[%s648 + $0x18] sm:%s640] %v655
                %v657 = vld [vmem:[%s647 + $0x20] sm:%s640]
                %658 = vst [vmem:[%s648 + $0x40] sm:%s640] %v657
                %v659 = vld [vmem:[%s647 + $0x28] sm:%s640]
                %660 = vst [vmem:[%s648 + $0x48] sm:%s640] %v659
                %v661 = vld [vmem:[%s647 + $0x30] sm:%s640]
                %662 = vst [vmem:[%s648 + $0x50] sm:%s640] %v661
                %v663 = vld [vmem:[%s647 + $0x38] sm:%s640]
                %664 = vst [vmem:[%s648 + $0x58] sm:%s640] %v663
                %v665 = vld [vmem:[%s647 + $0x40] sm:%s640]
                %666 = vst [vmem:[%s648 + $0x80] sm:%s640] %v665
                %v667 = vld [vmem:[%s647 + $0x48] sm:%s640]
                %668 = vst [vmem:[%s648 + $0x88] sm:%s640] %v667
                %v669 = vld [vmem:[%s647 + $0x50] sm:%s640]
                %670 = vst [vmem:[%s648 + $0x90] sm:%s640] %v669
                %v671 = vld [vmem:[%s647 + $0x58] sm:%s640]
                %672 = vst [vmem:[%s648 + $0x98] sm:%s640] %v671
                %v673 = vld [vmem:[%s647 + $0x60] sm:%s640]
                %674 = vst [vmem:[%s648 + $0xc0] sm:%s640] %v673
                %v675 = vld [vmem:[%s647 + $0x68] sm:%s640]
                %676 = vst [vmem:[%s648 + $0xc8] sm:%s640] %v675
                %v677 = vld [vmem:[%s647 + $0x70] sm:%s640]
                %678 = vst [vmem:[%s648 + $0xd0] sm:%s640] %v677
                %v679 = vld [vmem:[%s647 + $0x78] sm:%s640]
                %680 = vst [vmem:[%s648 + $0xd8] sm:%s640] %v679
              $region61: #{tpu_custom_call.1} parent=55 // loop_footer
                %s646 = sadd.s32 1, %s642
              $region62: #{tpu_custom_call.1} parent=55 // loop_footer_branch
                %641 = sbr.rel target = $region58
              $region63: #{tpu_custom_call.1} parent=55 // loop_exit
                _
            $region56: #{tpu_custom_call.1} parent=47 // pred_fallthru
              _
          $region48: #{tpu_custom_call.1} parent=43 // pred_fallthru
            _
          %725 = vnop
        $region44: #{tpu_custom_call.1} parent=31 // pred_fallthru
          _
        // Predicated region
        $region79: #{tpu_custom_call.1} parent=31 // pred_check
          %p726 = pneg %p151
        $region80: #{tpu_custom_call.1} parent=31 // pred_check_branch
          %728 = sbr.rel (%p726) target = $region82
        $region81: #{tpu_custom_call.1} parent=31 // pred_region
          %s729 = smul.u32 4, %s26
          %s730 = smul.addr %s25, 32
          %s731 = sadd.s32 %s729, %s730
          %s732 = smul.addr %s731, 8
          %s733 = scalar_lea.vmem %s4, %s732
          // Predicated region
          $region83: #{tpu_custom_call.1} parent=81 // pred_check
            _
          $region84: #{tpu_custom_call.1} parent=81 // pred_check_branch
            %735 = sbr.rel (0) target = $region86
          $region85: #{tpu_custom_call.1} parent=81 // pred_region
            // Predicated region
            $region87: #{tpu_custom_call.1} parent=85 // pred_check
              _
            $region88: #{tpu_custom_call.1} parent=85 // pred_check_branch
              %737 = sbr.rel (0) target = $region90
            $region89: #{tpu_custom_call.1} parent=85 // pred_region
              // Predicated region
              $region102: #{tpu_custom_call.1} parent=89 // pred_check
                _
              $region103: #{tpu_custom_call.1} parent=89 // pred_check_branch
                %783 = sbr.rel (0) target = $region105
              $region104: #{tpu_custom_call.1} parent=89 // pred_region
                loop: start=0, step=1, limit=1
                $region106: #{tpu_custom_call.1} parent=104 // loop_pre_header
                  _
                $region107: #{tpu_custom_call.1} parent=104 // loop_header
                  %s785 = sphi 0, %s789
                  %p786 = scmp.ge.s32.totalorder %s785, 1
                  %s790 = sphi %s620, %s620
                  %s791 = sphi %s733, %s733
                $region108: #{tpu_custom_call.1} parent=104 // loop_header_branch
                  %788 = sbr.rel (%p786) target = $region112
                $region109: #{tpu_custom_call.1} parent=104 // loop_body
                  %v792 = vld [vmem:[%s790] sm:$0xff]
                  %793 = vst [vmem:[%s791] sm:$0xff] %v792
                  %v794 = vld [vmem:[%s790 + $0x8] sm:$0xff]
                  %795 = vst [vmem:[%s791 + $0x8] sm:$0xff] %v794
                  %v796 = vld [vmem:[%s790 + $0x10] sm:$0xff]
                  %797 = vst [vmem:[%s791 + $0x10] sm:$0xff] %v796
                  %v798 = vld [vmem:[%s790 + $0x18] sm:$0xff]
                  %799 = vst [vmem:[%s791 + $0x18] sm:$0xff] %v798
                  %v800 = vld [vmem:[%s790 + $0x20] sm:$0xff]
                  %801 = vst [vmem:[%s791 + $0x40] sm:$0xff] %v800
                  %v802 = vld [vmem:[%s790 + $0x28] sm:$0xff]
                  %803 = vst [vmem:[%s791 + $0x48] sm:$0xff] %v802
                  %v804 = vld [vmem:[%s790 + $0x30] sm:$0xff]
                  %805 = vst [vmem:[%s791 + $0x50] sm:$0xff] %v804
                  %v806 = vld [vmem:[%s790 + $0x38] sm:$0xff]
                  %807 = vst [vmem:[%s791 + $0x58] sm:$0xff] %v806
                  %v808 = vld [vmem:[%s790 + $0x40] sm:$0xff]
                  %809 = vst [vmem:[%s791 + $0x80] sm:$0xff] %v808
                  %v810 = vld [vmem:[%s790 + $0x48] sm:$0xff]
                  %811 = vst [vmem:[%s791 + $0x88] sm:$0xff] %v810
                  %v812 = vld [vmem:[%s790 + $0x50] sm:$0xff]
                  %813 = vst [vmem:[%s791 + $0x90] sm:$0xff] %v812
                  %v814 = vld [vmem:[%s790 + $0x58] sm:$0xff]
                  %815 = vst [vmem:[%s791 + $0x98] sm:$0xff] %v814
                  %v816 = vld [vmem:[%s790 + $0x60] sm:$0xff]
                  %817 = vst [vmem:[%s791 + $0xc0] sm:$0xff] %v816
                  %v818 = vld [vmem:[%s790 + $0x68] sm:$0xff]
                  %819 = vst [vmem:[%s791 + $0xc8] sm:$0xff] %v818
                  %v820 = vld [vmem:[%s790 + $0x70] sm:$0xff]
                  %821 = vst [vmem:[%s791 + $0xd0] sm:$0xff] %v820
                  %v822 = vld [vmem:[%s790 + $0x78] sm:$0xff]
                  %823 = vst [vmem:[%s791 + $0xd8] sm:$0xff] %v822
                $region110: #{tpu_custom_call.1} parent=104 // loop_footer
                  %s789 = sadd.s32 1, %s785
                $region111: #{tpu_custom_call.1} parent=104 // loop_footer_branch
                  %784 = sbr.rel target = $region107
                $region112: #{tpu_custom_call.1} parent=104 // loop_exit
                  _
              $region105: #{tpu_custom_call.1} parent=89 // pred_fallthru
                _
              // Predicated region
              $region113: #{tpu_custom_call.1} parent=89 // pred_check
                _
              $region114: #{tpu_custom_call.1} parent=89 // pred_check_branch
                %825 = sbr.rel target = $region116
              $region115: #{tpu_custom_call.1} parent=89 // pred_region
                _
              $region116: #{tpu_custom_call.1} parent=89 // pred_fallthru
                _
            $region90: #{tpu_custom_call.1} parent=85 // pred_fallthru
              _
            // Predicated region
            $region91: #{tpu_custom_call.1} parent=85 // pred_check
              _
            $region92: #{tpu_custom_call.1} parent=85 // pred_check_branch
              %739 = sbr.rel target = $region94
            $region93: #{tpu_custom_call.1} parent=85 // pred_region
              %s741 = ssub.s32 256, 1
              loop: start=0, step=1, limit=1
              $region95: #{tpu_custom_call.1} parent=93 // loop_pre_header
                _
              $region96: #{tpu_custom_call.1} parent=93 // loop_header
                %s743 = sphi 0, %s747
                %p744 = scmp.ge.s32.totalorder %s743, 1
                %s748 = sphi %s620, %s620
                %s749 = sphi %s733, %s733
              $region97: #{tpu_custom_call.1} parent=93 // loop_header_branch
                %746 = sbr.rel (%p744) target = $region101
              $region98: #{tpu_custom_call.1} parent=93 // loop_body
                %v750 = vld [vmem:[%s748] sm:%s741]
                %751 = vst [vmem:[%s749] sm:%s741] %v750
                %v752 = vld [vmem:[%s748 + $0x8] sm:%s741]
                %753 = vst [vmem:[%s749 + $0x8] sm:%s741] %v752
                %v754 = vld [vmem:[%s748 + $0x10] sm:%s741]
                %755 = vst [vmem:[%s749 + $0x10] sm:%s741] %v754
                %v756 = vld [vmem:[%s748 + $0x18] sm:%s741]
                %757 = vst [vmem:[%s749 + $0x18] sm:%s741] %v756
                %v758 = vld [vmem:[%s748 + $0x20] sm:%s741]
                %759 = vst [vmem:[%s749 + $0x40] sm:%s741] %v758
                %v760 = vld [vmem:[%s748 + $0x28] sm:%s741]
                %761 = vst [vmem:[%s749 + $0x48] sm:%s741] %v760
                %v762 = vld [vmem:[%s748 + $0x30] sm:%s741]
                %763 = vst [vmem:[%s749 + $0x50] sm:%s741] %v762
                %v764 = vld [vmem:[%s748 + $0x38] sm:%s741]
                %765 = vst [vmem:[%s749 + $0x58] sm:%s741] %v764
                %v766 = vld [vmem:[%s748 + $0x40] sm:%s741]
                %767 = vst [vmem:[%s749 + $0x80] sm:%s741] %v766
                %v768 = vld [vmem:[%s748 + $0x48] sm:%s741]
                %769 = vst [vmem:[%s749 + $0x88] sm:%s741] %v768
                %v770 = vld [vmem:[%s748 + $0x50] sm:%s741]
                %771 = vst [vmem:[%s749 + $0x90] sm:%s741] %v770
                %v772 = vld [vmem:[%s748 + $0x58] sm:%s741]
                %773 = vst [vmem:[%s749 + $0x98] sm:%s741] %v772
                %v774 = vld [vmem:[%s748 + $0x60] sm:%s741]
                %775 = vst [vmem:[%s749 + $0xc0] sm:%s741] %v774
                %v776 = vld [vmem:[%s748 + $0x68] sm:%s741]
                %777 = vst [vmem:[%s749 + $0xc8] sm:%s741] %v776
                %v778 = vld [vmem:[%s748 + $0x70] sm:%s741]
                %779 = vst [vmem:[%s749 + $0xd0] sm:%s741] %v778
                %v780 = vld [vmem:[%s748 + $0x78] sm:%s741]
                %781 = vst [vmem:[%s749 + $0xd8] sm:%s741] %v780
              $region99: #{tpu_custom_call.1} parent=93 // loop_footer
                %s747 = sadd.s32 1, %s743
              $region100: #{tpu_custom_call.1} parent=93 // loop_footer_branch
                %742 = sbr.rel target = $region96
              $region101: #{tpu_custom_call.1} parent=93 // loop_exit
                _
            $region94: #{tpu_custom_call.1} parent=85 // pred_fallthru
              _
          $region86: #{tpu_custom_call.1} parent=81 // pred_fallthru
            _
          %826 = vnop
        $region82: #{tpu_custom_call.1} parent=31 // pred_fallthru
          _
        // Predicated region
        $region117: #{tpu_custom_call.1} parent=31 // pred_check
          %p827 = pneg %p179
        $region118: #{tpu_custom_call.1} parent=31 // pred_check_branch
          %829 = sbr.rel (%p827) target = $region120
        $region119: #{tpu_custom_call.1} parent=31 // pred_region
          %s830 = smul.u32 4, %s26
          %s831 = smul.addr %s25, 32
          %s832 = sadd.s32 %s830, %s831
          %s833 = smul.addr %s832, 8
          %s834 = scalar_lea.vmem %s5, %s833
          // Predicated region
          $region121: #{tpu_custom_call.1} parent=119 // pred_check
            _
          $region122: #{tpu_custom_call.1} parent=119 // pred_check_branch
            %836 = sbr.rel (0) target = $region124
          $region123: #{tpu_custom_call.1} parent=119 // pred_region
            // Predicated region
            $region125: #{tpu_custom_call.1} parent=123 // pred_check
              _
            $region126: #{tpu_custom_call.1} parent=123 // pred_check_branch
              %838 = sbr.rel (0) target = $region128
            $region127: #{tpu_custom_call.1} parent=123 // pred_region
              // Predicated region
              $region140: #{tpu_custom_call.1} parent=127 // pred_check
                _
              $region141: #{tpu_custom_call.1} parent=127 // pred_check_branch
                %884 = sbr.rel (0) target = $region143
              $region142: #{tpu_custom_call.1} parent=127 // pred_region
                loop: start=0, step=1, limit=1
                $region144: #{tpu_custom_call.1} parent=142 // loop_pre_header
                  _
                $region145: #{tpu_custom_call.1} parent=142 // loop_header
                  %s886 = sphi 0, %s890
                  %p887 = scmp.ge.s32.totalorder %s886, 1
                  %s891 = sphi %s624, %s624
                  %s892 = sphi %s834, %s834
                $region146: #{tpu_custom_call.1} parent=142 // loop_header_branch
                  %889 = sbr.rel (%p887) target = $region150
                $region147: #{tpu_custom_call.1} parent=142 // loop_body
                  %v893 = vld [vmem:[%s891] sm:$0xff]
                  %894 = vst [vmem:[%s892] sm:$0xff] %v893
                  %v895 = vld [vmem:[%s891 + $0x8] sm:$0xff]
                  %896 = vst [vmem:[%s892 + $0x8] sm:$0xff] %v895
                  %v897 = vld [vmem:[%s891 + $0x10] sm:$0xff]
                  %898 = vst [vmem:[%s892 + $0x10] sm:$0xff] %v897
                  %v899 = vld [vmem:[%s891 + $0x18] sm:$0xff]
                  %900 = vst [vmem:[%s892 + $0x18] sm:$0xff] %v899
                  %v901 = vld [vmem:[%s891 + $0x20] sm:$0xff]
                  %902 = vst [vmem:[%s892 + $0x40] sm:$0xff] %v901
                  %v903 = vld [vmem:[%s891 + $0x28] sm:$0xff]
                  %904 = vst [vmem:[%s892 + $0x48] sm:$0xff] %v903
                  %v905 = vld [vmem:[%s891 + $0x30] sm:$0xff]
                  %906 = vst [vmem:[%s892 + $0x50] sm:$0xff] %v905
                  %v907 = vld [vmem:[%s891 + $0x38] sm:$0xff]
                  %908 = vst [vmem:[%s892 + $0x58] sm:$0xff] %v907
                  %v909 = vld [vmem:[%s891 + $0x40] sm:$0xff]
                  %910 = vst [vmem:[%s892 + $0x80] sm:$0xff] %v909
                  %v911 = vld [vmem:[%s891 + $0x48] sm:$0xff]
                  %912 = vst [vmem:[%s892 + $0x88] sm:$0xff] %v911
                  %v913 = vld [vmem:[%s891 + $0x50] sm:$0xff]
                  %914 = vst [vmem:[%s892 + $0x90] sm:$0xff] %v913
                  %v915 = vld [vmem:[%s891 + $0x58] sm:$0xff]
                  %916 = vst [vmem:[%s892 + $0x98] sm:$0xff] %v915
                  %v917 = vld [vmem:[%s891 + $0x60] sm:$0xff]
                  %918 = vst [vmem:[%s892 + $0xc0] sm:$0xff] %v917
                  %v919 = vld [vmem:[%s891 + $0x68] sm:$0xff]
                  %920 = vst [vmem:[%s892 + $0xc8] sm:$0xff] %v919
                  %v921 = vld [vmem:[%s891 + $0x70] sm:$0xff]
                  %922 = vst [vmem:[%s892 + $0xd0] sm:$0xff] %v921
                  %v923 = vld [vmem:[%s891 + $0x78] sm:$0xff]
                  %924 = vst [vmem:[%s892 + $0xd8] sm:$0xff] %v923
                $region148: #{tpu_custom_call.1} parent=142 // loop_footer
                  %s890 = sadd.s32 1, %s886
                $region149: #{tpu_custom_call.1} parent=142 // loop_footer_branch
                  %885 = sbr.rel target = $region145
                $region150: #{tpu_custom_call.1} parent=142 // loop_exit
                  _
              $region143: #{tpu_custom_call.1} parent=127 // pred_fallthru
                _
              // Predicated region
              $region151: #{tpu_custom_call.1} parent=127 // pred_check
                _
              $region152: #{tpu_custom_call.1} parent=127 // pred_check_branch
                %926 = sbr.rel target = $region154
              $region153: #{tpu_custom_call.1} parent=127 // pred_region
                _
              $region154: #{tpu_custom_call.1} parent=127 // pred_fallthru
                _
            $region128: #{tpu_custom_call.1} parent=123 // pred_fallthru
              _
            // Predicated region
            $region129: #{tpu_custom_call.1} parent=123 // pred_check
              _
            $region130: #{tpu_custom_call.1} parent=123 // pred_check_branch
              %840 = sbr.rel target = $region132
            $region131: #{tpu_custom_call.1} parent=123 // pred_region
              %s842 = ssub.s32 256, 1
              loop: start=0, step=1, limit=1
              $region133: #{tpu_custom_call.1} parent=131 // loop_pre_header
                _
              $region134: #{tpu_custom_call.1} parent=131 // loop_header
                %s844 = sphi 0, %s848
                %p845 = scmp.ge.s32.totalorder %s844, 1
                %s849 = sphi %s624, %s624
                %s850 = sphi %s834, %s834
              $region135: #{tpu_custom_call.1} parent=131 // loop_header_branch
                %847 = sbr.rel (%p845) target = $region139
              $region136: #{tpu_custom_call.1} parent=131 // loop_body
                %v851 = vld [vmem:[%s849] sm:%s842]
                %852 = vst [vmem:[%s850] sm:%s842] %v851
                %v853 = vld [vmem:[%s849 + $0x8] sm:%s842]
                %854 = vst [vmem:[%s850 + $0x8] sm:%s842] %v853
                %v855 = vld [vmem:[%s849 + $0x10] sm:%s842]
                %856 = vst [vmem:[%s850 + $0x10] sm:%s842] %v855
                %v857 = vld [vmem:[%s849 + $0x18] sm:%s842]
                %858 = vst [vmem:[%s850 + $0x18] sm:%s842] %v857
                %v859 = vld [vmem:[%s849 + $0x20] sm:%s842]
                %860 = vst [vmem:[%s850 + $0x40] sm:%s842] %v859
                %v861 = vld [vmem:[%s849 + $0x28] sm:%s842]
                %862 = vst [vmem:[%s850 + $0x48] sm:%s842] %v861
                %v863 = vld [vmem:[%s849 + $0x30] sm:%s842]
                %864 = vst [vmem:[%s850 + $0x50] sm:%s842] %v863
                %v865 = vld [vmem:[%s849 + $0x38] sm:%s842]
                %866 = vst [vmem:[%s850 + $0x58] sm:%s842] %v865
                %v867 = vld [vmem:[%s849 + $0x40] sm:%s842]
                %868 = vst [vmem:[%s850 + $0x80] sm:%s842] %v867
                %v869 = vld [vmem:[%s849 + $0x48] sm:%s842]
                %870 = vst [vmem:[%s850 + $0x88] sm:%s842] %v869
                %v871 = vld [vmem:[%s849 + $0x50] sm:%s842]
                %872 = vst [vmem:[%s850 + $0x90] sm:%s842] %v871
                %v873 = vld [vmem:[%s849 + $0x58] sm:%s842]
                %874 = vst [vmem:[%s850 + $0x98] sm:%s842] %v873
                %v875 = vld [vmem:[%s849 + $0x60] sm:%s842]
                %876 = vst [vmem:[%s850 + $0xc0] sm:%s842] %v875
                %v877 = vld [vmem:[%s849 + $0x68] sm:%s842]
                %878 = vst [vmem:[%s850 + $0xc8] sm:%s842] %v877
                %v879 = vld [vmem:[%s849 + $0x70] sm:%s842]
                %880 = vst [vmem:[%s850 + $0xd0] sm:%s842] %v879
                %v881 = vld [vmem:[%s849 + $0x78] sm:%s842]
                %882 = vst [vmem:[%s850 + $0xd8] sm:%s842] %v881
              $region137: #{tpu_custom_call.1} parent=131 // loop_footer
                %s848 = sadd.s32 1, %s844
              $region138: #{tpu_custom_call.1} parent=131 // loop_footer_branch
                %843 = sbr.rel target = $region134
              $region139: #{tpu_custom_call.1} parent=131 // loop_exit
                _
            $region132: #{tpu_custom_call.1} parent=123 // pred_fallthru
              _
          $region124: #{tpu_custom_call.1} parent=119 // pred_fallthru
            _
          %927 = vnop
        $region120: #{tpu_custom_call.1} parent=31 // pred_fallthru
          _
      $region32: #{tpu_custom_call.1} parent=5 // pred_fallthru
        _
      %p928 = scmp.le.s32.totalorder 2, %s16
      // Predicated region
      $region155: #{tpu_custom_call.1} parent=5 // pred_check
        %p929 = pneg %p928
      $region156: #{tpu_custom_call.1} parent=5 // pred_check_branch
        %931 = sbr.rel (%p929) target = $region158
      $region157: #{tpu_custom_call.1} parent=5 // pred_region
        %s932 = ssub.s32 %s16, 2
        // Predicated region
        $region159: #{tpu_custom_call.1} parent=157 // pred_check
          %p933 = pneg %p129
        $region160: #{tpu_custom_call.1} parent=157 // pred_check_branch
          %935 = sbr.rel (%p933) target = $region162
        $region161: #{tpu_custom_call.1} parent=157 // pred_region
          %s936 = sand.u32 %s114, 1
          %s937 = sand.u32 %s114, 1
          %s938 = smul.addr %s937, 128
          %s939 = scalar_lea.vmem [#allocation6], %s938
        $region162: #{tpu_custom_call.1} parent=157 // pred_fallthru
          _
        // Predicated region
        $region163: #{tpu_custom_call.1} parent=157 // pred_check
          %p940 = pneg %p157
        $region164: #{tpu_custom_call.1} parent=157 // pred_check_branch
          %942 = sbr.rel (%p940) target = $region166
        $region165: #{tpu_custom_call.1} parent=157 // pred_region
          %s943 = sand.u32 %s142, 1
          %s944 = sand.u32 %s142, 1
          %s945 = smul.addr %s944, 128
          %s946 = scalar_lea.vmem [#allocation7], %s945
        $region166: #{tpu_custom_call.1} parent=157 // pred_fallthru
          _
        // Predicated region
        $region167: #{tpu_custom_call.1} parent=157 // pred_check
          %p947 = pneg %p185
        $region168: #{tpu_custom_call.1} parent=157 // pred_check_branch
          %949 = sbr.rel (%p947) target = $region170
        $region169: #{tpu_custom_call.1} parent=157 // pred_region
          %s950 = sand.u32 %s170, 1
          %s951 = sand.u32 %s170, 1
          %s952 = smul.addr %s951, 128
          %s953 = scalar_lea.vmem [#allocation8], %s952
        $region170: #{tpu_custom_call.1} parent=157 // pred_fallthru
          _
      $region158: #{tpu_custom_call.1} parent=5 // pred_fallthru
        _
    $region6: #{tpu_custom_call.1} parent=1 // loop_footer
      %s20 = sadd.s32 1, %s16
    $region7: #{tpu_custom_call.1} parent=1 // loop_footer_branch
      %15 = sbr.rel target = $region3
    $region8: #{tpu_custom_call.1} parent=1 // loop_exit
      _
    %954 = vsyncpa [#allocation3], 1
    %s955 = scalar_lea.sflag [#allocation3], 1
    %956 = vsyncpa %s955, 1
    %957 = vsyncpa [#allocation5], 1

</llo_original>
